<compile_context>
chip_gen: v7x
topology: tpu7x:2x2x1
jax: 0.10.0
libtpu: 0.0.40
codegen_flags: <defaults>
</compile_context>

<pallas_src>
import jax
import jax.numpy as jnp
from jax.experimental import pallas as pl
from jax.experimental.pallas import tpu as pltpu


def _linear_kernel(x_ref, w_ref, b_ref, o_ref):
    # x: (TB, K) bf16   w: (K, Dp) bf16   b: (1, Dp) f32   o: (TB, Dp) f32
    acc = jnp.dot(x_ref[...], w_ref[...], preferred_element_type=jnp.float32)
    o_ref[...] = acc + b_ref[...]


def _round_up(x, m):
    return ((x + m - 1) // m) * m


def task_specific_cap_forward(x, w, b, *, tile_b=256):
    """y = x @ w + b.

    x: (B, K) float32
    w: (K, D) float32  (torch nn.Linear weight, transposed)
    b: (D,) or (1, D) float32
    Returns (B, D) float32.
    """
    B, K = x.shape
    Kw, D = w.shape
    assert K == Kw, "weight in_features must match x feature dim"

    # --- wrapper-side padding so every block is (8,128)-aligned ------------
    tb = min(tile_b, _round_up(max(B, 1), 8))      # batch tile (multiple of 8)
    Bp = _round_up(B, tb)                          # padded batch
    Dp = _round_up(D, 128)                         # lane-dense output width

    xp = x if Bp == B else jnp.pad(x, ((0, Bp - B), (0, 0)))
    wp = w if Dp == D else jnp.pad(w, ((0, 0), (0, Dp - D)))
    b2 = jnp.reshape(b, (1, D)).astype(jnp.float32)
    bp = b2 if Dp == D else jnp.pad(b2, ((0, 0), (0, Dp - D)))

    # bf16 matmul operands, f32 accumulation + f32 epilogue.
    x_bf = xp.astype(jnp.bfloat16)
    w_bf = wp.astype(jnp.bfloat16)

    grid = (Bp // tb,)
    out = pl.pallas_call(
        _linear_kernel,
        out_shape=jax.ShapeDtypeStruct((Bp, Dp), jnp.float32),
        grid_spec=pltpu.PrefetchScalarGridSpec(
            num_scalar_prefetch=0,
            grid=grid,
            in_specs=[
                pl.BlockSpec((tb, K), lambda i: (i, 0)),    # x batch tile
                pl.BlockSpec((K, Dp), lambda i: (0, 0)),    # full weight (VMEM-resident)
                pl.BlockSpec((1, Dp), lambda i: (0, 0)),    # bias
            ],
            out_specs=pl.BlockSpec((tb, Dp), lambda i: (i, 0)),
        ),
        compiler_params=pltpu.CompilerParams(
            dimension_semantics=("parallel",),   # batch axis -> megacore
        ),
    )(x_bf, w_bf, bp)

    # TODO(synk): for very large K*Dp that overflows scoped VMEM, add a K (and
    # D) tiling grid axis with a VMEM f32 accumulator; unnecessary at these
    # sizes since the whole weight fits comfortably in VMEM.
    return out[:B, :D]


def init_params(key, input_size, output_size):
    """Deterministic synthetic init (not a checkpoint load)."""
    kw, kb = jax.random.split(key)
    scale = 0.05
    w = scale * jax.random.normal(kw, (input_size, output_size), jnp.float32)
    b = scale * jax.random.normal(kb, (output_size,), jnp.float32)
    return w, b


def reference_forward(x, w, b):
    """Pure-JAX f32 reference matching torch nn.Linear forward."""
    return x @ w + b[None, :]


if __name__ == "__main__":
    # Small shapes consistent with the module: batch=10 (non-multiple of 8 to
    # exercise ragged-batch padding), input_size=64, output_size=96 (not a
    # multiple of 128, to exercise the lane-dense D padding path).
    batch, input_size, output_size = 10, 64, 96

    key = jax.random.PRNGKey(0)
    k_x, k_p = jax.random.split(key)
    x = jax.random.normal(k_x, (batch, input_size), jnp.float32)
    w, b = init_params(k_p, input_size, output_size)

    out = task_specific_cap_forward(x, w, b)
    out = jax.block_until_ready(out)

    ref = reference_forward(x, w, b)
    assert out.shape == (batch, output_size), out.shape
    # bf16 matmul operands -> tolerance loosened relative to the f32 reference.
    assert jnp.allclose(out, ref, atol=2e-2, rtol=2e-2), (
        float(jnp.max(jnp.abs(out - ref)))
    )

    print("KERNEL_OK")
</pallas_src>

<mosaic_0001>
module attributes {stable_mosaic.version = 11 : i64} {
  func.func @_linear_kernel(%arg0: i32, %arg1: memref<16x64xbf16, #tpu.memory_space<vmem>>, %arg2: memref<64x128xbf16, #tpu.memory_space<vmem>>, %arg3: memref<1x128xf32, #tpu.memory_space<vmem>>, %arg4: memref<16x128xf32, #tpu.memory_space<vmem>>) attributes {dimension_semantics = [#tpu.dimension_semantics<parallel>], iteration_bounds = array<i64: 1>, scalar_prefetch = 0 : i64, scratch_operands = 0 : i64, tpu.core_type = #tpu.core_type<tc>, window_params = [{transform_indices = @transform_0, window_bounds = array<i64: 16, 64>}, {pipeline_mode = #tpu.pipeline_mode<synchronous>, transform_indices = @transform_1, window_bounds = array<i64: 64, 128>}, {pipeline_mode = #tpu.pipeline_mode<synchronous>, transform_indices = @transform_2, window_bounds = array<i64: 1, 128>}, {transform_indices = @transform_3, window_bounds = array<i64: 16, 128>}]} {
    %c0 = arith.constant 0 : index
    %c0_0 = arith.constant 0 : index
    %0 = vector.load %arg1[%c0, %c0_0] : memref<16x64xbf16, #tpu.memory_space<vmem>>, vector<16x64xbf16>
    %c0_1 = arith.constant 0 : index
    %c0_2 = arith.constant 0 : index
    %1 = vector.load %arg2[%c0_1, %c0_2] : memref<64x128xbf16, #tpu.memory_space<vmem>>, vector<64x128xbf16>
    %cst = arith.constant dense<0.000000e+00> : vector<16x128xf32>
    %2 = tpu.matmul %0, %1, %cst {dimension_numbers = #tpu.dot_dimension_numbers<[1], [0], [0], [1], [0, 0, 1, 1], [], []>} : vector<16x64xbf16>, vector<64x128xbf16>, vector<16x128xf32> -> vector<16x128xf32>
    %c0_3 = arith.constant 0 : index
    %c0_4 = arith.constant 0 : index
    %3 = vector.load %arg3[%c0_3, %c0_4] : memref<1x128xf32, #tpu.memory_space<vmem>>, vector<1x128xf32>
    %4 = vector.broadcast %3 : vector<1x128xf32> to vector<16x128xf32>
    %5 = arith.addf %2, %4 : vector<16x128xf32>
    %c0_5 = arith.constant 0 : index
    %c0_6 = arith.constant 0 : index
    %6 = vector.load %arg4[%c0_5, %c0_6] : memref<16x128xf32, #tpu.memory_space<vmem>>, vector<16x128xf32>
    tpu.vector_store %arg4[%c0_5, %c0_6], %5 {strides = array<i32>} : memref<16x128xf32, #tpu.memory_space<vmem>>, vector<16x128xf32>,
    return
  }
  func.func @transform_0(%arg0: i32) -> (i32, i32) {
    %c0_i32 = arith.constant 0 : i32
    %c0_i32_0 = arith.constant 0 : i32
    return %arg0, %c0_i32 : i32, i32
  }
  func.func @transform_1(%arg0: i32) -> (i32, i32) {
    %c0_i32 = arith.constant 0 : i32
    %c0_i32_0 = arith.constant 0 : i32
    %c0_i32_1 = arith.constant 0 : i32
    return %c0_i32, %c0_i32_0 : i32, i32
  }
  func.func @transform_2(%arg0: i32) -> (i32, i32) {
    %c0_i32 = arith.constant 0 : i32
    %c0_i32_0 = arith.constant 0 : i32
    %c0_i32_1 = arith.constant 0 : i32
    return %c0_i32, %c0_i32_0 : i32, i32
  }
  func.func @transform_3(%arg0: i32) -> (i32, i32) {
    %c0_i32 = arith.constant 0 : i32
    %c0_i32_0 = arith.constant 0 : i32
    return %arg0, %c0_i32 : i32, i32
  }
}

</mosaic_0001>

<llo_original>
// kernel: tpu_custom_call.1
$region0: #{tpu_custom_call.1}
  #allocation0 [shape = 'u32[]', space=smem, size = 0x4, offset = 0x4, fixed_abs, tag = 'smem constant byte address 0x4 - core index']
  #allocation1 [shape = 'u32[144,128]{1,0:T(1,128)}', space=vmem, size = 0x12000, scoped, tag = 'internal scratch']
  %s0 = inlined_call_operand.hbm [shape: bf16[16,64], index: 0, kind: input, shape index: {}]
  %s1 = inlined_call_operand.hbm [shape: bf16[64,128], index: 1, kind: input, shape index: {}]
  %s2 = inlined_call_operand.vmem [shape: f32[1,128], index: 2, kind: input, shape index: {}]
  %s3 = inlined_call_operand.hbm [shape: f32[16,128], index: 3, kind: output, shape index: {}]
  %s4 = sld [smem:[#allocation0]]
  $region30: #{tpu_custom_call.1} parent=0
    _
  %s6 = ssub.s32 1, %s4
  %s7 = scalar_select 0, %s6, %s4
  $region1: #{tpu_custom_call.1} parent=0
    #allocation2 [shape = 'u8[4096]{0}', space=vmem, size = 0x1000, scoped, tag = 'input window, operand 0, single buffered']
    #allocation3 [shape = 's32[1]{0}', space=sflag, size = 0x4, scoped, tag = 'scoped memory for tpu_custom_call.1']
    #allocation4 [shape = 's32[1]{0}', space=sflag, size = 0x4, scoped, tag = 'scoped memory for tpu_custom_call.1']
    #allocation5 [shape = 'u8[16384]{0}', space=vmem, size = 0x4000, scoped, tag = 'input window, operand 1, single buffered']
    #allocation6 [shape = 's32[1]{0}', space=sflag, size = 0x4, scoped, tag = 'scoped memory for tpu_custom_call.1']
    #allocation7 [shape = 'u8[8192]{0}', space=vmem, size = 0x2000, scoped, tag = 'output window, operand 0, single buffered']
    %8 = vsyncpa [#allocation3], 0
    %9 = vsyncpa [#allocation6], 0
    %10 = vsyncpa [#allocation4], 0
    // Predicated region
    $region2: #{tpu_custom_call.1} parent=1 // pred_check
      _
    $region3: #{tpu_custom_call.1} parent=1 // pred_check_branch
      %12 = sbr.rel (0) target = $region5
    $region4: #{tpu_custom_call.1} parent=1 // pred_region
      %s14 = ssub.s32 128, 128
      %15 = vsyncadd [#allocation3], %s14
      %s16 = sshll.u32 [#allocation2], 4
      %s17 = int_to_ptr.vmem [resolvable:$true] %s16
      %22 = dma.hbm_to_vmem [thread:$0]  %s0, 128, %s17, [#allocation3], 64, 64, 4
    $region5: #{tpu_custom_call.1} parent=1 // pred_fallthru
      _
    // Predicated region
    $region6: #{tpu_custom_call.1} parent=1 // pred_check
      _
    $region7: #{tpu_custom_call.1} parent=1 // pred_check_branch
      %24 = sbr.rel (0) target = $region9
    $region8: #{tpu_custom_call.1} parent=1 // pred_region
      %s26 = ssub.s32 512, 512
      %27 = vsyncadd [#allocation6], %s26
      %s28 = sshll.u32 [#allocation5], 4
      %s29 = int_to_ptr.vmem [resolvable:$true] %s28
      %34 = dma.hbm_to_vmem [thread:$0]  %s1, 512, %s29, [#allocation6], 64, 64, 4
    $region9: #{tpu_custom_call.1} parent=1 // pred_fallthru
      _
    // Predicated region
    $region10: #{tpu_custom_call.1} parent=1 // pred_check
      _
    $region11: #{tpu_custom_call.1} parent=1 // pred_check_branch
      %36 = sbr.rel (0) target = $region13
    $region12: #{tpu_custom_call.1} parent=1 // pred_region
      _
    $region13: #{tpu_custom_call.1} parent=1 // pred_fallthru
      _
    // Predicated region
    $region14: #{tpu_custom_call.1} parent=1 // pred_check
      _
    $region15: #{tpu_custom_call.1} parent=1 // pred_check_branch
      %38 = sbr.rel (0) target = $region17
    $region16: #{tpu_custom_call.1} parent=1 // pred_region
      %39 = dma.done [#allocation3], 128
    $region17: #{tpu_custom_call.1} parent=1 // pred_fallthru
      _
    // Predicated region
    $region18: #{tpu_custom_call.1} parent=1 // pred_check
      _
    $region19: #{tpu_custom_call.1} parent=1 // pred_check_branch
      %41 = sbr.rel (0) target = $region21
    $region20: #{tpu_custom_call.1} parent=1 // pred_region
      %42 = dma.done [#allocation6], 512
    $region21: #{tpu_custom_call.1} parent=1 // pred_fallthru
      _
    %v44 = vld [vmem:[#allocation2] sm:$0xf]
    %v45 = vld [vmem:[#allocation2 + $0x4] sm:$0xf]
    %v46 = vld [vmem:[#allocation5] sm:$0xf]
    %v47 = vld [vmem:[#allocation5 + $0x4] sm:$0xf]
    %v48 = vld [vmem:[#allocation5 + $0x8] sm:$0xf]
    %v49 = vld [vmem:[#allocation5 + $0xc] sm:$0xf]
    %v50 = vld [vmem:[#allocation5 + $0x10] sm:$0xf]
    %v51 = vld [vmem:[#allocation5 + $0x14] sm:$0xf]
    %v52 = vld [vmem:[#allocation5 + $0x18] sm:$0xf]
    %v53 = vld [vmem:[#allocation5 + $0x1c] sm:$0xf]
    %v54 = vld [vmem:[%s2] sm:$0x1]
    %v56 = vlaneseq
    %v57 = vshrl.u32 %v56, 7
    %v58 = vsub.s32 0, %v57
    %v59 = vrot.slane %v54, %v58
    %v63 = vunpack.c.l.b16 %v44
    %v64 = vunpack.c.l.b16 %v45
    %v65 = vpack.c.b16 %v64, %v63
    %v74 = vunpack.c.l.b16 %v46
    %v75 = vunpack.c.l.b16 %v47
    %v76 = vunpack.c.l.b16 %v48
    %v77 = vunpack.c.l.b16 %v49
    %v78 = vunpack.c.l.b16 %v50
    %v79 = vunpack.c.l.b16 %v51
    %v80 = vunpack.c.l.b16 %v52
    %v81 = vunpack.c.l.b16 %v53
    %v82 = vpack.c.b16 %v75, %v74
    %v83 = vpack.c.b16 %v77, %v76
    %v84 = vpack.c.b16 %v79, %v78
    %v85 = vpack.c.b16 %v81, %v80
    %vm90 = vcmask 523264
    %v92 = vsel %vm90, %v65, 0
    %94 = vmatprep.subr.bf16.mxu0 0
    %95 = vmatpush1.bf16.msra.mxu0 %v82
    %96 = vmatprep.subr.bf16.mxu0 0
    %97 = vmatpush1.bf16.msra.mxu0 %v83
    %98 = vmatprep.subr.bf16.mxu0 0
    %99 = vmatpush1.bf16.msra.mxu0 %v84
    %100 = vmatprep.subr.bf16.mxu0 0
    %101 = vmatpush1.bf16.msra.mxu0 %v85
    %102 = vmatprep.subr.bf16.mxu0 0
    %103 = vmatpush1.bf16.msra.mxu0 0
    %104 = vmatprep.subr.bf16.mxu0 0
    %105 = vmatpush1.bf16.msra.mxu0 0
    %106 = vmatprep.subr.bf16.mxu0 0
    %107 = vmatpush1.bf16.msra.mxu0 0
    %108 = vmatprep.subr.bf16.mxu0 0
    %109 = vmatpush1.bf16.msra.mxu0 0
    %110 = vmatprep.subr.bf16.mxu0 0
    %111 = vmatpush1.bf16.msra.mxu0 0
    %112 = vmatprep.subr.bf16.mxu0 0
    %113 = vmatpush1.bf16.msra.mxu0 0
    %114 = vmatprep.subr.bf16.mxu0 0
    %115 = vmatpush1.bf16.msra.mxu0 0
    %116 = vmatprep.subr.bf16.mxu0 0
    %117 = vmatpush1.bf16.msra.mxu0 0
    %118 = vmatprep.subr.bf16.mxu0 0
    %119 = vmatpush1.bf16.msra.mxu0 0
    %120 = vmatprep.subr.bf16.mxu0 0
    %121 = vmatpush1.bf16.msra.mxu0 0
    %122 = vmatprep.subr.bf16.mxu0 0
    %123 = vmatpush1.bf16.msra.mxu0 0
    %124 = vmatprep.subr.bf16.mxu0 0
    %125 = vmatpush1.bf16.msra.mxu0 0
    %126 = vmatprep.mubr.bf16.mxu0 0
    %127 = vmatmul.mubr.bf16.gmra.mrb[0].mxu0 %v92
    %v128 = vpop.f32.mrb[0].mxu0
    %v129 = vadd.f32 %v59, %v128
    %v130 = vpop.f32.mrb[0].mxu0
    %v131 = vpop.f32.mrb[0].mxu0
    %v132 = vadd.f32 %v59, %v131
    %v133 = vpop.f32.mrb[0].mxu0
    %134 = vdwg.mxu0
    %135 = vst [vmem:[#allocation7] sm:$0xff] %v129
    %136 = vst [vmem:[#allocation7 + $0x8] sm:$0xff] %v132
    // Predicated region
    $region22: #{tpu_custom_call.1} parent=1 // pred_check
      _
    $region23: #{tpu_custom_call.1} parent=1 // pred_check_branch
      %138 = sbr.rel (0) target = $region25
    $region24: #{tpu_custom_call.1} parent=1 // pred_region
      %s140 = ssub.s32 256, 256
      %141 = vsyncadd [#allocation4], %s140
      %s142 = sshll.u32 [#allocation7], 4
      %s143 = int_to_ptr.vmem [resolvable:$true] %s142
      %148 = dma.vmem_to_hbm [thread:$0]  %s143, 256, %s3, [#allocation4], 128, 128, 8
    $region25: #{tpu_custom_call.1} parent=1 // pred_fallthru
      _
    // Predicated region
    $region26: #{tpu_custom_call.1} parent=1 // pred_check
      _
    $region27: #{tpu_custom_call.1} parent=1 // pred_check_branch
      %150 = sbr.rel (0) target = $region29
    $region28: #{tpu_custom_call.1} parent=1 // pred_region
      %151 = dma.done [#allocation4], 256
    $region29: #{tpu_custom_call.1} parent=1 // pred_fallthru
      _
    %152 = vsyncpa [#allocation3], 1
    %153 = vsyncpa [#allocation6], 1
    %154 = vsyncpa [#allocation4], 1

</llo_original>
